<compile_context>
chip_gen: v5e
topology: v5e:2x2
jax: 0.10.0
libtpu: 0.0.40
codegen_flags: <defaults>
</compile_context>

<pallas_src>
import jax
import jax.numpy as jnp
from jax.experimental import pallas as pl
from jax.experimental.pallas import tpu as pltpu


def _conv1x1_tile_kernel(x_ref, w_ref, b_ref, o_ref):
    """One (image, spatial-tile) block: o = W @ x + b.

    x_ref : (Cin, T)    activations (size-1 batch dim squeezed away)
    w_ref : (Cout, Cin) 1x1 conv weights
    b_ref : (Cout, 1)   bias (lane-broadcast)
    o_ref : (Cout, T)
    """
    acc = jnp.dot(w_ref[...], x_ref[...], preferred_element_type=jnp.float32)
    o_ref[...] = (acc + b_ref[...]).astype(o_ref.dtype)


def _conv1x1_batch_kernel(x_ref, w_ref, b_ref, o_ref):
    """One block of Nb whole images: o[i] = W @ x[i] + b.

    x_ref : (Nb, Cin, HW)
    w_ref : (Cout, Cin)
    b_ref : (Cout, 1)
    o_ref : (Nb, Cout, HW)
    """
    w = w_ref[...]
    bias = b_ref[...]
    for i in range(x_ref.shape[0]):        # Nb is static -> unrolled clean matmuls
        acc = jnp.dot(w, x_ref[i], preferred_element_type=jnp.float32)
        o_ref[i] = (acc + bias).astype(o_ref.dtype)


def _vmem_capacity_bytes():
    """Per-TensorCore VMEM capacity, with a conservative fallback."""
    try:
        info = pltpu.get_tpu_info()
        cap = int(getattr(info, "vmem_capacity_bytes", 0))
        if cap > 0:
            return cap
    except Exception:
        pass
    return 64 << 20                         # v7x per-TC VMEM (smallest of v5e/v6e/v7x)


_MAX_UNROLL_IMAGES = 32                     # cap static unroll in the batched kernel


def outconv_pallas(x_nchw, w, b, *, max_spatial_tile=None):
    """Forward of `outconv`: y = Conv2d(in_ch, out_ch, kernel_size=1)(x).

    x_nchw : (N, Cin, H, W)
    w      : (Cout, Cin, 1, 1) native PyTorch layout, or already-squeezed (Cout, Cin)
    b      : (Cout,)
    returns (N, Cout, H, W), same dtype as x.
    """
    if w.ndim == 4:                         # accept native PyTorch weight shape
        w = w.reshape(w.shape[0], w.shape[1])
    N, Cin, H, W = x_nchw.shape
    Cout = w.shape[0]
    HW = H * W
    x2 = x_nchw.reshape(N, Cin, HW)         # free reshape (contiguous NCHW)
    dtype_bytes = jnp.dtype(x_nchw.dtype).itemsize

    # ---- spatial tile budget from per-generation VMEM --------------------
    vmem = _vmem_capacity_bytes()
    budget = vmem // 4                      # double-buffered x+out working set
    per_elem = 2 * (Cin + Cout) * dtype_bytes
    t_cap = budget // max(per_elem, 1)
    t_cap = max(128, min(16384, (t_cap // 128) * 128))
    if max_spatial_tile is not None:        # testing / manual override hook
        t_cap = max(128, min(t_cap, (max_spatial_tile // 128) * 128))

    vmem_limit = int(min(vmem * 3 // 4, 96 << 20))   # > default scoped limit on v5e

    if HW > t_cap:
        # ---- Case A: large feature map -> tile spatial axis, 1 image/step.
        T = t_cap
        grid = (N, pl.cdiv(HW, T))          # partial last block handled by Pallas
        out = pl.pallas_call(
            _conv1x1_tile_kernel,
            out_shape=jax.ShapeDtypeStruct((N, Cout, HW), x_nchw.dtype),
            grid_spec=pltpu.PrefetchScalarGridSpec(
                num_scalar_prefetch=0,
                grid=grid,
                in_specs=[
                    pl.BlockSpec((pl.Squeezed(), Cin, T), lambda n, s: (n, 0, s)),
                    pl.BlockSpec((Cout, Cin), lambda n, s: (0, 0)),
                    pl.BlockSpec((Cout, 1), lambda n, s: (0, 0)),
                ],
                out_specs=pl.BlockSpec((pl.Squeezed(), Cout, T),
                                       lambda n, s: (n, 0, s)),
            ),
            compiler_params=pltpu.CompilerParams(
                dimension_semantics=("parallel", "parallel"),
                vmem_limit_bytes=vmem_limit),
        )(x2, w, b.reshape(Cout, 1))
    else:
        # ---- Case B: small feature map -> batch Nb whole images per step so
        # per-step DMAs aren't dominated by the fixed grid-step overhead.
        Nb = max(1, min(t_cap // max(HW, 1), _MAX_UNROLL_IMAGES, N))
        if N >= 2:
            Nb = min(Nb, pl.cdiv(N, 2))     # keep >=2 parallel steps (v7x megacore)
        grid = (pl.cdiv(N, Nb),)            # partial last batch block handled by Pallas
        out = pl.pallas_call(
            _conv1x1_batch_kernel,
            out_shape=jax.ShapeDtypeStruct((N, Cout, HW), x_nchw.dtype),
            grid_spec=pltpu.PrefetchScalarGridSpec(
                num_scalar_prefetch=0,
                grid=grid,
                in_specs=[
                    pl.BlockSpec((Nb, Cin, HW), lambda n: (n, 0, 0)),
                    pl.BlockSpec((Cout, Cin), lambda n: (0, 0)),
                    pl.BlockSpec((Cout, 1), lambda n: (0, 0)),
                ],
                out_specs=pl.BlockSpec((Nb, Cout, HW), lambda n: (n, 0, 0)),
            ),
            compiler_params=pltpu.CompilerParams(
                dimension_semantics=("parallel",),
                vmem_limit_bytes=vmem_limit),
        )(x2, w, b.reshape(Cout, 1))

    return out.reshape(N, Cout, H, W)


def reference_outconv(x_nchw, w, b):
    """Pure-JAX reference (einsum) for correctness checking."""
    if w.ndim == 4:
        w = w.reshape(w.shape[0], w.shape[1])
    y = jnp.einsum("oc,nchw->nohw", w, x_nchw)
    return y + b[None, :, None, None]


if __name__ == "__main__":
    key = jax.random.PRNGKey(0)
    kx, kw, kb, kx2, kx3 = jax.random.split(key, 5)

    # Small shapes consistent with the module: batch=2, in_ch=4, out_ch=8, 16x16.
    N, Cin, Cout, H, W = 2, 4, 8, 16, 16
    x = jax.random.normal(kx, (N, Cin, H, W), jnp.float32)
    bound = 1.0 / (Cin ** 0.5)              # PyTorch Conv2d init bound (k=1)
    w = jax.random.uniform(kw, (Cout, Cin, 1, 1), jnp.float32, -bound, bound)
    b = jax.random.uniform(kb, (Cout,), jnp.float32, -bound, bound)

    out = jax.block_until_ready(outconv_pallas(x, w, b))
    ref = reference_outconv(x, w, b)
    assert out.shape == ref.shape, (out.shape, ref.shape)
    assert jnp.allclose(out, ref, atol=1e-4, rtol=1e-4), float(
        jnp.max(jnp.abs(out - ref)))

    # Exercise the spatially-tiled path (cdiv grid + partial last spatial block).
    xa = jax.random.normal(kx2, (1, Cin, 20, 20), jnp.float32)      # HW = 400
    oa = jax.block_until_ready(outconv_pallas(xa, w, b, max_spatial_tile=128))
    ra = reference_outconv(xa, w, b)
    assert jnp.allclose(oa, ra, atol=1e-4, rtol=1e-4), float(
        jnp.max(jnp.abs(oa - ra)))

    # Exercise the image-batched path (Nb > 1 + partial last batch block).
    xb = jax.random.normal(kx3, (5, Cin, 8, 8), jnp.float32)        # HW = 64
    ob = jax.block_until_ready(outconv_pallas(xb, w, b, max_spatial_tile=256))
    rb = reference_outconv(xb, w, b)
    assert jnp.allclose(ob, rb, atol=1e-4, rtol=1e-4), float(
        jnp.max(jnp.abs(ob - rb)))

    print("KERNEL_OK")
</pallas_src>

<mosaic_0001>
module attributes {stable_mosaic.version = 11 : i64} {
  func.func @_conv1x1_batch_kernel(%arg0: i32, %arg1: memref<1x4x256xf32, #tpu.memory_space<vmem>>, %arg2: memref<8x4xf32, #tpu.memory_space<vmem>>, %arg3: memref<8x1xf32, #tpu.memory_space<vmem>>, %arg4: memref<1x8x256xf32, #tpu.memory_space<vmem>>) attributes {dimension_semantics = [#tpu.dimension_semantics<parallel>], iteration_bounds = array<i64: 2>, scalar_prefetch = 0 : i64, scratch_operands = 0 : i64, tpu.core_type = #tpu.core_type<tc>, window_params = [{transform_indices = @transform_0, window_bounds = array<i64: 1, 4, 256>}, {pipeline_mode = #tpu.pipeline_mode<synchronous>, transform_indices = @transform_1, window_bounds = array<i64: 8, 4>}, {pipeline_mode = #tpu.pipeline_mode<synchronous>, transform_indices = @transform_2, window_bounds = array<i64: 8, 1>}, {transform_indices = @transform_3, window_bounds = array<i64: 1, 8, 256>}]} {
    %c0 = arith.constant 0 : index
    %c0_0 = arith.constant 0 : index
    %0 = vector.load %arg2[%c0, %c0_0] : memref<8x4xf32, #tpu.memory_space<vmem>>, vector<8x4xf32>
    %c0_1 = arith.constant 0 : index
    %c0_2 = arith.constant 0 : index
    %1 = vector.load %arg3[%c0_1, %c0_2] : memref<8x1xf32, #tpu.memory_space<vmem>>, vector<8x1xf32>
    %c0_3 = arith.constant 0 : index
    %c0_4 = arith.constant 0 : index
    %c0_5 = arith.constant 0 : index
    %2 = vector.load %arg1[%c0_3, %c0_4, %c0_5] : memref<1x4x256xf32, #tpu.memory_space<vmem>>, vector<1x4x256xf32>
    %3 = vector.shape_cast %2 : vector<1x4x256xf32> to vector<4x256xf32>
    %cst = arith.constant dense<0.000000e+00> : vector<8x256xf32>
    %4 = tpu.matmul %0, %3, %cst {dimension_numbers = #tpu.dot_dimension_numbers<[1], [0], [0], [1], [0, 0, 1, 1], [], []>} : vector<8x4xf32>, vector<4x256xf32>, vector<8x256xf32> -> vector<8x256xf32>
    %5 = vector.broadcast %1 : vector<8x1xf32> to vector<8x256xf32>
    %6 = arith.addf %4, %5 : vector<8x256xf32>
    %c0_6 = arith.constant 0 : index
    %c0_7 = arith.constant 0 : index
    %c0_8 = arith.constant 0 : index
    %7 = vector.load %arg4[%c0_6, %c0_7, %c0_8] : memref<1x8x256xf32, #tpu.memory_space<vmem>>, vector<1x8x256xf32>
    %8 = vector.shape_cast %7 : vector<1x8x256xf32> to vector<8x256xf32>
    %9 = vector.shape_cast %6 : vector<8x256xf32> to vector<1x8x256xf32>
    tpu.vector_store %arg4[%c0_6, %c0_7, %c0_8], %9 {strides = array<i32>} : memref<1x8x256xf32, #tpu.memory_space<vmem>>, vector<1x8x256xf32>,
    return
  }
  func.func @transform_0(%arg0: i32) -> (i32, i32, i32) {
    %c0_i32 = arith.constant 0 : i32
    %c0_i32_0 = arith.constant 0 : i32
    %c0_i32_1 = arith.constant 0 : i32
    return %arg0, %c0_i32, %c0_i32_0 : i32, i32, i32
  }
  func.func @transform_1(%arg0: i32) -> (i32, i32) {
    %c0_i32 = arith.constant 0 : i32
    %c0_i32_0 = arith.constant 0 : i32
    %c0_i32_1 = arith.constant 0 : i32
    return %c0_i32, %c0_i32_0 : i32, i32
  }
  func.func @transform_2(%arg0: i32) -> (i32, i32) {
    %c0_i32 = arith.constant 0 : i32
    %c0_i32_0 = arith.constant 0 : i32
    %c0_i32_1 = arith.constant 0 : i32
    return %c0_i32, %c0_i32_0 : i32, i32
  }
  func.func @transform_3(%arg0: i32) -> (i32, i32, i32) {
    %c0_i32 = arith.constant 0 : i32
    %c0_i32_0 = arith.constant 0 : i32
    %c0_i32_1 = arith.constant 0 : i32
    return %arg0, %c0_i32, %c0_i32_0 : i32, i32, i32
  }
}

</mosaic_0001>

<llo_original>
// kernel: tpu_custom_call.1
$region0: #{tpu_custom_call.1}
  #allocation0 [shape = 'u32[]', space=smem, size = 0x4, offset = 0x4, fixed_abs, tag = 'smem constant byte address 0x4 - core index']
  #allocation1 [shape = 'u32[72,128]{1,0:T(1,128)}', space=vmem, size = 0x9000, scoped, tag = 'internal scratch']
  %s0 = inlined_call_operand.vmem [shape: f32[2,4,256], index: 0, kind: input, shape index: {}]
  %s1 = inlined_call_operand.vmem [shape: f32[8,4], index: 1, kind: input, shape index: {}]
  %s2 = inlined_call_operand.vmem [shape: f32[8,1], index: 2, kind: input, shape index: {}]
  %s3 = inlined_call_operand.hbm [shape: f32[2,8,256], index: 3, kind: output, shape index: {}]
  %s4 = sld [smem:[#allocation0]]
  $region45: #{tpu_custom_call.1} parent=0
    _
  %s6 = ssub.s32 1, %s4
  %s7 = scalar_select 0, %s6, %s4
  $region1: #{tpu_custom_call.1} parent=0
    #allocation2 [shape = 'u8[16384]{0}', space=vmem, size = 0x4000, scoped, tag = 'output window, operand 0']
    #allocation3 [shape = 's32[2]{0}', space=sflag, size = 0x8, scoped, tag = 'scoped memory for tpu_custom_call.1']
    %8 = vsyncpa [#allocation3], 0
    %s9 = scalar_lea.sflag [#allocation3], 1
    %10 = vsyncpa %s9, 0
    loop: start=0, step=1, limit=4
    $region2: #{tpu_custom_call.1} parent=1 // loop_pre_header
      _
    $region3: #{tpu_custom_call.1} parent=1 // loop_header
      %s12 = sphi 0, %s16
      %p13 = scmp.ge.s32.totalorder %s12, 4
      %s22 = sphi 0, %s24
      %s25 = sphi 0, %s22
      %s26 = sphi 0, %s25
      %s42 = sphi 0, %s26
      %s46 = sphi 0, %s46
      %s48 = sphi 0, %s46
      %s49 = sphi 0, %s48
      %s63 = sphi 0, %s49
      %s67 = sphi 0, %s67
      %s69 = sphi 0, %s67
      %s70 = sphi 0, %s69
      %s84 = sphi 0, %s70
      %s90 = sphi 0, %s92
      %s93 = sphi 0, %s90
      %s94 = sphi 0, %s93
      %s110 = sphi 0, %s94
    $region4: #{tpu_custom_call.1} parent=1 // loop_header_branch
      %15 = sbr.rel (%p13) target = $region8
    $region5: #{tpu_custom_call.1} parent=1 // loop_body
      %s17 = ssub.s32 %s12, 1
      %s18 = ssub.s32 %s12, 2
      %s19 = sadd.s32 %s12, 1
      %s20 = ssub.s32 %s12, %s19
      %p21 = scmp.eq.s32.totalorder %s20, 0
      %s23 = sadd.s32 %s22, 1
      %s24 = scalar_select %p21, %s22, %s23
      %p27 = pneg %p21
      %p28 = scmp.eq.s32.totalorder %s12, 1
      %p29 = por %p27, %p28
      %p30 = scmp.ne.s32.totalorder %s22, %s25
      %p31 = scmp.eq.s32.totalorder %s12, 0
      %p32 = por %p30, %p31
      %p33 = scmp.ne.s32.totalorder %s22, %s25
      %p34 = scmp.eq.s32.totalorder %s17, 1
      %p35 = por %p33, %p34
      %p36 = scmp.ne.s32.totalorder %s25, %s26
      %p37 = scmp.eq.s32.totalorder %s17, 0
      %p38 = por %p36, %p37
      %p39 = scmp.ne.s32.totalorder %s25, %s26
      %p40 = scmp.eq.s32.totalorder %s18, 1
      %p41 = por %p39, %p40
      %p43 = scmp.ne.s32.totalorder %s26, %s42
      %p44 = scmp.eq.s32.totalorder %s18, 0
      %p45 = por %p43, %p44
      %s47 = sadd.s32 %s46, 1
      %p50 = scmp.eq.s32.totalorder %s12, 1
      %p51 = scmp.ne.s32.totalorder %s46, %s48
      %p52 = scmp.eq.s32.totalorder %s12, 0
      %p53 = por %p51, %p52
      %p54 = scmp.ne.s32.totalorder %s46, %s48
      %p55 = scmp.eq.s32.totalorder %s17, 1
      %p56 = por %p54, %p55
      %p57 = scmp.ne.s32.totalorder %s48, %s49
      %p58 = scmp.eq.s32.totalorder %s17, 0
      %p59 = por %p57, %p58
      %p60 = scmp.ne.s32.totalorder %s48, %s49
      %p61 = scmp.eq.s32.totalorder %s18, 1
      %p62 = por %p60, %p61
      %p64 = scmp.ne.s32.totalorder %s49, %s63
      %p65 = scmp.eq.s32.totalorder %s18, 0
      %p66 = por %p64, %p65
      %s68 = sadd.s32 %s67, 1
      %p71 = scmp.eq.s32.totalorder %s12, 1
      %p72 = scmp.ne.s32.totalorder %s67, %s69
      %p73 = scmp.eq.s32.totalorder %s12, 0
      %p74 = por %p72, %p73
      %p75 = scmp.ne.s32.totalorder %s67, %s69
      %p76 = scmp.eq.s32.totalorder %s17, 1
      %p77 = por %p75, %p76
      %p78 = scmp.ne.s32.totalorder %s69, %s70
      %p79 = scmp.eq.s32.totalorder %s17, 0
      %p80 = por %p78, %p79
      %p81 = scmp.ne.s32.totalorder %s69, %s70
      %p82 = scmp.eq.s32.totalorder %s18, 1
      %p83 = por %p81, %p82
      %p85 = scmp.ne.s32.totalorder %s70, %s84
      %p86 = scmp.eq.s32.totalorder %s18, 0
      %p87 = por %p85, %p86
      %s88 = ssub.s32 %s12, %s19
      %p89 = scmp.eq.s32.totalorder %s88, 0
      %s91 = sadd.s32 %s90, 1
      %s92 = scalar_select %p89, %s90, %s91
      %p95 = pneg %p89
      %p96 = scmp.eq.s32.totalorder %s12, 1
      %p97 = por %p95, %p96
      %p98 = scmp.ne.s32.totalorder %s90, %s93
      %p99 = scmp.eq.s32.totalorder %s12, 0
      %p100 = por %p98, %p99
      %p101 = scmp.ne.s32.totalorder %s90, %s93
      %p102 = scmp.eq.s32.totalorder %s17, 1
      %p103 = por %p101, %p102
      %p104 = scmp.ne.s32.totalorder %s93, %s94
      %p105 = scmp.eq.s32.totalorder %s17, 0
      %p106 = por %p104, %p105
      %p107 = scmp.ne.s32.totalorder %s93, %s94
      %p108 = scmp.eq.s32.totalorder %s18, 1
      %p109 = por %p107, %p108
      %p111 = scmp.ne.s32.totalorder %s94, %s110
      %p112 = scmp.eq.s32.totalorder %s18, 0
      %p113 = por %p111, %p112
      %p114 = scmp.le.s32.totalorder 1, %s12
      %p115 = scmp.lt.s32.totalorder %s12, 3
      %p116 = pnand %p114, %p115
      %p117 = pneg %p116
      // Predicated region
      $region9: #{tpu_custom_call.1} parent=5 // pred_check
        _
      $region10: #{tpu_custom_call.1} parent=5 // pred_check_branch
        %119 = sbr.rel (%p116) target = $region12
      $region11: #{tpu_custom_call.1} parent=5 // pred_region
        %s120 = ssub.s32 %s12, 1
        // Predicated region
        $region13: #{tpu_custom_call.1} parent=11 // pred_check
          %p121 = pneg %p59
        $region14: #{tpu_custom_call.1} parent=11 // pred_check_branch
          %123 = sbr.rel (%p121) target = $region16
        $region15: #{tpu_custom_call.1} parent=11 // pred_region
          _
        $region16: #{tpu_custom_call.1} parent=11 // pred_fallthru
          _
        // Predicated region
        $region17: #{tpu_custom_call.1} parent=11 // pred_check
          %p124 = pneg %p80
        $region18: #{tpu_custom_call.1} parent=11 // pred_check_branch
          %126 = sbr.rel (%p124) target = $region20
        $region19: #{tpu_custom_call.1} parent=11 // pred_region
          _
        $region20: #{tpu_custom_call.1} parent=11 // pred_fallthru
          _
      $region12: #{tpu_custom_call.1} parent=5 // pred_fallthru
        _
      %p127 = scmp.lt.s32.totalorder %s12, 2
      // Predicated region
      $region21: #{tpu_custom_call.1} parent=5 // pred_check
        %p128 = pneg %p127
      $region22: #{tpu_custom_call.1} parent=5 // pred_check_branch
        %130 = sbr.rel (%p128) target = $region24
      $region23: #{tpu_custom_call.1} parent=5 // pred_region
        // Predicated region
        $region25: #{tpu_custom_call.1} parent=23 // pred_check
          %p131 = pneg %p32
        $region26: #{tpu_custom_call.1} parent=23 // pred_check_branch
          %133 = sbr.rel (%p131) target = $region28
        $region27: #{tpu_custom_call.1} parent=23 // pred_region
          %p134 = scmp.lt.s32.totalorder %s12, 1
          %s135 = scalar_select %p134, %s12, 1
          %s136 = smul.addr %s135, 2
          %s137 = smul.addr %s136, 4
          %s138 = scalar_lea.vmem %s0, %s137
        $region28: #{tpu_custom_call.1} parent=23 // pred_fallthru
          _
      $region24: #{tpu_custom_call.1} parent=5 // pred_fallthru
        _
      %p139 = scmp.le.s32.totalorder 1, %s12
      %p140 = scmp.lt.s32.totalorder %s12, 3
      %p141 = pnand %p139, %p140
      %p142 = pneg %p141
      // Predicated region
      $region29: #{tpu_custom_call.1} parent=5 // pred_check
        _
      $region30: #{tpu_custom_call.1} parent=5 // pred_check_branch
        %144 = sbr.rel (%p141) target = $region32
      $region31: #{tpu_custom_call.1} parent=5 // pred_region
        %s145 = ssub.s32 %s12, 1
        %p146 = scmp.lt.s32.totalorder %s17, 1
        %s147 = scalar_select %p146, %s17, 1
        %s148 = smul.addr %s147, 2
        %s149 = smul.addr %s148, 4
        %s150 = scalar_lea.vmem %s0, %s149
        %p151 = pneg %p38
        %p152 = pneg %p35
        %p153 = pneg %p59
        %p154 = pneg %p56
        %p155 = pneg %p80
        %p156 = pneg %p77
        %p157 = pneg %p106
        %p158 = pneg %p103
        %s159 = sand.u32 %s93, 1
        %s160 = scalar_lea.sflag [#allocation3], %s159
        %s161 = sand.u32 %s93, 1
        %s162 = smul.addr %s161, 16
        %s163 = scalar_lea.vmem [#allocation2], %s162
        %p164 = scmp.lt.s32.totalorder %s17, 1
        %s165 = scalar_select %p164, %s17, 1
        %s166 = smul.addr %s165, 2
        %s167 = smul.addr %s166, 4
        %s168 = scalar_lea.vmem %s0, %s167
        %v169 = vld [vmem:[%s1] sm:$0xff]
        %v170 = vld [vmem:[%s2] sm:$0xff]
        %v171 = vld [vmem:[%s168] sm:$0xff]
        %173 = vset.pattern.permute.xlu0 0
        %174 = vperm.xlu0 %173, %v170
        %v175 = vpop.permute.xlu0 %174
        %178 = vst [vmem:[#allocation1] ss:$2 sm:$0xff] %v171
        %v179 = vld.sshfl [vmem:[#allocation1] sm:$0xff pattern:$0x75316420]
        %v180 = vld.sshfl [vmem:[#allocation1 + $0x8] sm:$0xff pattern:$0x75316420]
        %vm181 = vcmask 31744
        %v183 = vsel %vm181, %v169, 0
        %vm185 = vcmask 1043456
        %v186 = vsel %vm185, %v179, 0
        %v188 = vsel %vm185, %v180, 0
        %190 = vmatpush.msra.mxu0 0.0
        %191 = vmatpush.msra.mxu0 0.0
        %192 = vmatpush.msra.mxu0 0.0
        %193 = vmatpush.msra.mxu0 0.0
        %194 = vmatpush.msra.mxu0 0.0
        %195 = vmatpush.msra.mxu0 0.0
        %196 = vmatpush.msra.mxu0 0.0
        %197 = vmatpush.msra.mxu0 0.0
        %198 = vmatpush.msra.mxu0 0.0
        %199 = vmatpush.msra.mxu0 0.0
        %200 = vmatpush.msra.mxu0 0.0
        %201 = vmatpush.msra.mxu0 0.0
        %202 = vmatpush.msra.mxu0 0.0
        %203 = vmatpush.msra.mxu0 0.0
        %204 = vmatpush.msra.mxu0 0.0
        %205 = vmatpush.msra.mxu0 %v186
        %206 = vmatmul.f32.gmra.mxu0 %v183
        %v207 = vpop.f32.mrf.mxu0
        %v208 = vadd.f32 %v175, %v207
        %209 = vdwg.mxu0
        %210 = vmatpush.msra.mxu0 0.0
        %211 = vmatpush.msra.mxu0 0.0
        %212 = vmatpush.msra.mxu0 0.0
        %213 = vmatpush.msra.mxu0 0.0
        %214 = vmatpush.msra.mxu0 0.0
        %215 = vmatpush.msra.mxu0 0.0
        %216 = vmatpush.msra.mxu0 0.0
        %217 = vmatpush.msra.mxu0 0.0
        %218 = vmatpush.msra.mxu0 0.0
        %219 = vmatpush.msra.mxu0 0.0
        %220 = vmatpush.msra.mxu0 0.0
        %221 = vmatpush.msra.mxu0 0.0
        %222 = vmatpush.msra.mxu0 0.0
        %223 = vmatpush.msra.mxu0 0.0
        %224 = vmatpush.msra.mxu0 0.0
        %225 = vmatpush.msra.mxu0 %v188
        %226 = vmatmul.f32.gmra.mxu0 %v183
        %v227 = vpop.f32.mrf.mxu0
        %v228 = vadd.f32 %v175, %v227
        %229 = vdwg.mxu0
        %230 = vst [vmem:[%s163] sm:$0xff] %v208
        %231 = vst [vmem:[%s163 + $0x8] sm:$0xff] %v228
        %s232 = sand.u32 %s93, 1
        %s233 = scalar_lea.sflag [#allocation3], %s232
        %s234 = sand.u32 %s93, 1
        %s235 = smul.addr %s234, 16
        %s236 = scalar_lea.vmem [#allocation2], %s235
        // Predicated region
        $region33: #{tpu_custom_call.1} parent=31 // pred_check
          %p237 = pneg %p103
        $region34: #{tpu_custom_call.1} parent=31 // pred_check_branch
          %239 = sbr.rel (%p237) target = $region36
        $region35: #{tpu_custom_call.1} parent=31 // pred_region
          %241 = vsyncadd %s233, 0
          %s242 = smul.addr %s17, 2
          %s243 = smul.addr %s242, 8
          %s244 = scalar_lea.hbm %s3, %s243
          %s246 = sshll.u32 %s236, 4
          %s247 = int_to_ptr.vmem [resolvable:$true] %s246
          %s248 = sshll.u32 %s244, 4
          %s249 = int_to_ptr.hbm [resolvable:$true] %s248
          %251 = dma.vmem_to_hbm [thread:$0]  %s247, 256, %s249, %s233
        $region36: #{tpu_custom_call.1} parent=31 // pred_fallthru
          _
      $region32: #{tpu_custom_call.1} parent=5 // pred_fallthru
        _
      %p252 = scmp.le.s32.totalorder 2, %s12
      // Predicated region
      $region37: #{tpu_custom_call.1} parent=5 // pred_check
        %p253 = pneg %p252
      $region38: #{tpu_custom_call.1} parent=5 // pred_check_branch
        %255 = sbr.rel (%p253) target = $region40
      $region39: #{tpu_custom_call.1} parent=5 // pred_region
        %s256 = ssub.s32 %s12, 2
        // Predicated region
        $region41: #{tpu_custom_call.1} parent=39 // pred_check
          %p257 = pneg %p109
        $region42: #{tpu_custom_call.1} parent=39 // pred_check_branch
          %259 = sbr.rel (%p257) target = $region44
        $region43: #{tpu_custom_call.1} parent=39 // pred_region
          %s260 = sand.u32 %s94, 1
          %s261 = scalar_lea.sflag [#allocation3], %s260
          %s262 = sand.u32 %s94, 1
          %s263 = smul.addr %s262, 16
          %s264 = scalar_lea.vmem [#allocation2], %s263
          %266 = dma.done %s261, 256
        $region44: #{tpu_custom_call.1} parent=39 // pred_fallthru
          _
      $region40: #{tpu_custom_call.1} parent=5 // pred_fallthru
        _
    $region6: #{tpu_custom_call.1} parent=1 // loop_footer
      %s16 = sadd.s32 1, %s12
    $region7: #{tpu_custom_call.1} parent=1 // loop_footer_branch
      %11 = sbr.rel target = $region3
    $region8: #{tpu_custom_call.1} parent=1 // loop_exit
      _
    %267 = vsyncpa [#allocation3], 1
    %s268 = scalar_lea.sflag [#allocation3], 1
    %269 = vsyncpa %s268, 1

</llo_original>
